<compile_context>
chip_gen: v6e
topology: v6e:2x2x1
jax: 0.10.0
libtpu: 0.0.40
codegen_flags: <defaults>
</compile_context>

<pallas_src>
import jax
import jax.numpy as jnp
from jax.experimental import pallas as pl
from jax.experimental.pallas import tpu as pltpu


def _round_up(x: int, m: int) -> int:
    return (x + m - 1) // m * m


def _cdiv(a: int, b: int) -> int:
    return (a + b - 1) // b


def make_lstm_model4(input_size: int, action_size: int, ff_size: list[int],
                     param_dtype=jnp.float32):
    assert len(ff_size) >= 2, "LSTMModel4 requires at least 2 hidden layers"
    assert ff_size[-2] == ff_size[-1], (
        "LSTMModel4's ff output width must equal the LSTMCell input width "
        "(ff_size[-2] == ff_size[-1])")
    H = ff_size[-1]
    A = action_size
    # ff MLP layer dims: input_size -> ff_size[:-2]... -> ff_size[-1]
    ff_dims = [input_size] + list(ff_size[:-2]) + [ff_size[-1]]
    n_ff = len(ff_dims) - 1

    DIN_P = _round_up(input_size, 128)   # lane-dense input width
    HP = _round_up(H, 128)               # padded h/c width (state / slab layout)
    GW = _round_up(4 * H, 128)           # packed gate width (combined padding only)
    NH = 1 + 2 * A                       # value + action
    NH_PAD = _round_up(NH, 128)          # padded head width
    OUT_W = 2 * HP + NH_PAD              # packed output slab width (lane dense)

    # padded ff layer widths (in_pad, out_pad)
    ff_pad = []
    prev = DIN_P
    for d_out in ff_dims[1:]:
        out_pad = _round_up(d_out, 128)
        ff_pad.append((prev, out_pad))
        prev = out_pad
    assert prev == HP  # ff output feeds the LSTM cell input

    # ------------------------------------------------------------------ kernel
    def kernel(*refs):
        idx = 0
        x_ref = refs[idx]; idx += 1
        ff_w, ff_b = [], []
        for _ in range(n_ff):
            ff_w.append(refs[idx]); ff_b.append(refs[idx + 1]); idx += 2
        w_x_ref, w_h_ref, b_g_ref = refs[idx], refs[idx + 1], refs[idx + 2]; idx += 3
        h0_ref, c0_ref = refs[idx], refs[idx + 1]; idx += 2
        w_head_ref, b_head_ref = refs[idx], refs[idx + 1]; idx += 2
        out_ref = refs[idx]

        # --- feed-forward MLP (MXU matmuls + VPU relu), padded lane-dense ---
        x = x_ref[...]
        for li in range(n_ff):
            w = ff_w[li][...]
            x = jnp.dot(x.astype(w.dtype), w, preferred_element_type=jnp.float32)
            x = x + ff_b[li][...].astype(jnp.float32)
            if li < n_ff - 1:
                x = jnp.maximum(x, 0.0)

        # --- LSTM cell: two accumulating gate matmuls (no concat temp) -------
        w_x = w_x_ref[...]
        w_h = w_h_ref[...]
        h0 = h0_ref[...]
        gates = (jnp.dot(x.astype(w_x.dtype), w_x,
                         preferred_element_type=jnp.float32)
                 + jnp.dot(h0.astype(w_h.dtype), w_h,
                           preferred_element_type=jnp.float32)
                 + b_g_ref[...].astype(jnp.float32))

        # Gates packed contiguously at stride H, PyTorch order i, f, g, o.
        # Elementwise math restricted to the live H columns of each gate.
        i_g = jax.nn.sigmoid(gates[:, 0 * H:1 * H])
        f_g = jax.nn.sigmoid(gates[:, 1 * H:2 * H])
        g_g = jnp.tanh(gates[:, 2 * H:3 * H])
        o_g = jax.nn.sigmoid(gates[:, 3 * H:4 * H])
        c_prev = c0_ref[...][:, :H]
        c_new = f_g * c_prev + i_g * g_g
        h_new = o_g * jnp.tanh(c_new)

        # --- fused output heads (value | action) -----------------------------
        w_head = w_head_ref[...]
        heads = jnp.dot(h_new.astype(w_head.dtype), w_head,
                        preferred_element_type=jnp.float32)
        heads = heads + b_head_ref[...].astype(jnp.float32)

        # --- packed output slab: [h | c | heads] ------------------------------
        # (h/c stores are masked when H < 128; pad columns are never read back)
        out_ref[:, 0:H] = h_new
        out_ref[:, HP:HP + H] = c_new
        out_ref[:, 2 * HP:2 * HP + NH_PAD] = heads

    # -------------------------------------------------------- param packing
    def pack_params(params, dtype=None):
        """Logical (PyTorch-equivalent, transposed) params -> padded kernel params."""
        dt = param_dtype if dtype is None else dtype

        packed_ff = []
        in_w = DIN_P
        for (w, b) in params["ff"]:
            d_in, d_out = w.shape
            out_pad = _round_up(d_out, 128)
            wp = jnp.zeros((in_w, out_pad), dt).at[:d_in, :d_out].set(w.astype(dt))
            bp = jnp.zeros((1, out_pad), dt).at[:, :d_out].set(b.astype(dt))
            packed_ff.append((wp, bp))
            in_w = out_pad

        lstm_in = params["w_ih"].shape[0]           # = ff_size[-2] (== H)
        w_x = jnp.zeros((HP, GW), dt).at[:lstm_in, :4 * H].set(
            params["w_ih"].astype(dt))
        w_h = jnp.zeros((HP, GW), dt).at[:H, :4 * H].set(
            params["w_hh"].astype(dt))
        b_g = jnp.zeros((1, GW), dt).at[:, :4 * H].set(
            (params["b_ih"] + params["b_hh"]).astype(dt))

        w_head = jnp.zeros((H, NH_PAD), dt)
        w_head = w_head.at[:, 0:1].set(params["w_v"].astype(dt))
        w_head = w_head.at[:, 1:1 + 2 * A].set(params["w_a"].astype(dt))
        b_head = jnp.zeros((1, NH_PAD), dt)
        b_head = b_head.at[:, 0:1].set(params["b_v"].astype(dt))
        b_head = b_head.at[:, 1:1 + 2 * A].set(params["b_a"].astype(dt))

        return {"ff": packed_ff, "w_x": w_x, "w_h": w_h, "b_g": b_g,
                "w_head": w_head, "b_head": b_head}

    # --------------------------------------------------------------- forward
    def forward(x, hidden, packed):
        h0, c0 = hidden
        B = x.shape[0]

        # Tile selection: minimize batch-padding waste, cap tiles near 512 rows,
        # and give the "parallel" grid >=2 blocks (two v7x TensorCores) when the
        # batch allows it.
        n_blocks = _cdiv(B, 512)
        if B >= 16:
            n_blocks = max(n_blocks, 2)
        TM = _round_up(_cdiv(B, n_blocks), 8)
        Bp = TM * n_blocks

        x_p = jnp.zeros((Bp, DIN_P), jnp.float32).at[:B, :input_size].set(
            x.astype(jnp.float32))
        h0_p = jnp.zeros((Bp, HP), jnp.float32).at[:B, :H].set(h0.astype(jnp.float32))
        c0_p = jnp.zeros((Bp, HP), jnp.float32).at[:B, :H].set(c0.astype(jnp.float32))
        # TODO(synk): for recurrent rollouts carry h/c in this padded (Bp, HP)
        # layout between steps (and alias the slab) instead of re-padding/slicing.

        args = [x_p]
        for w, b in packed["ff"]:
            args += [w, b]
        args += [packed["w_x"], packed["w_h"], packed["b_g"], h0_p, c0_p,
                 packed["w_head"], packed["b_head"]]

        def row_spec(width):              # batch-tiled activations / state
            return pl.BlockSpec((TM, width), lambda i: (i, 0))

        def full_spec(arr):               # weights: VMEM-resident across grid
            return pl.BlockSpec(arr.shape, lambda i: (0, 0))

        in_specs = [row_spec(DIN_P)]
        for w, b in packed["ff"]:
            in_specs += [full_spec(w), full_spec(b)]
        in_specs += [full_spec(packed["w_x"]), full_spec(packed["w_h"]),
                     full_spec(packed["b_g"]),
                     row_spec(HP), row_spec(HP),
                     full_spec(packed["w_head"]), full_spec(packed["b_head"])]

        # VMEM budget from actual buffer sizes (inputs/outputs double-buffered),
        # clamped to a range valid on all of v5e / v6e / v7x.
        weight_bytes = 0
        for w, b in packed["ff"]:
            weight_bytes += int(w.size) * w.dtype.itemsize
            weight_bytes += int(b.size) * b.dtype.itemsize
        for k in ("w_x", "w_h", "b_g", "w_head", "b_head"):
            a = packed[k]
            weight_bytes += int(a.size) * a.dtype.itemsize
        act_bytes = TM * (DIN_P + 2 * HP) * 4
        out_bytes = TM * OUT_W * 4
        tmp_bytes = TM * (sum(op for _, op in ff_pad) + GW + 8 * H + NH_PAD) * 4
        need = 2 * (weight_bytes + act_bytes + out_bytes) + tmp_bytes
        vmem_limit = int(min(56 * 1024 * 1024, max(16 * 1024 * 1024, 2 * need)))

        slab = pl.pallas_call(
            kernel,
            out_shape=jax.ShapeDtypeStruct((Bp, OUT_W), jnp.float32),
            grid=(n_blocks,),
            in_specs=in_specs,
            out_specs=pl.BlockSpec((TM, OUT_W), lambda i: (i, 0)),
            compiler_params=pltpu.CompilerParams(
                dimension_semantics=("parallel",),
                vmem_limit_bytes=vmem_limit),
        )(*args)

        h = slab[:B, 0:H]
        c = slab[:B, HP:HP + H]
        value = slab[:B, 2 * HP:2 * HP + 1]
        action = slab[:B, 2 * HP + 1:2 * HP + 1 + 2 * A]
        return {"hidden": (h, c), "value": value,
                "action_mean": action[:, :A],
                "action_logstd": action[:, A:], "misc": {}}

    return forward, pack_params, ff_dims


def init_params(key, input_size, action_size, ff_size, ff_dims):
    """Deterministic PyTorch-style uniform init: U(-1/sqrt(fan_in), 1/sqrt(fan_in)).

    Returns *logical* params: every weight stored transposed (in, out)."""
    H = ff_size[-1]

    def linear(k, fan_in, fan_out):
        bound = 1.0 / jnp.sqrt(jnp.float32(fan_in))
        kw, kb = jax.random.split(k)
        w = jax.random.uniform(kw, (fan_in, fan_out), jnp.float32, -bound, bound)
        b = jax.random.uniform(kb, (1, fan_out), jnp.float32, -bound, bound)
        return w, b

    keys = jax.random.split(key, len(ff_dims) - 1 + 4 + 2)
    ki = 0
    ff = []
    for li in range(len(ff_dims) - 1):
        ff.append(linear(keys[ki], ff_dims[li], ff_dims[li + 1])); ki += 1

    lstm_in = ff_size[-2]
    bound = 1.0 / jnp.sqrt(jnp.float32(H))
    k_ih, k_bih, k_hh, k_bhh = keys[ki], keys[ki + 1], keys[ki + 2], keys[ki + 3]
    ki += 4
    w_ih = jax.random.uniform(k_ih, (lstm_in, 4 * H), jnp.float32, -bound, bound)
    b_ih = jax.random.uniform(k_bih, (1, 4 * H), jnp.float32, -bound, bound)
    w_hh = jax.random.uniform(k_hh, (H, 4 * H), jnp.float32, -bound, bound)
    b_hh = jax.random.uniform(k_bhh, (1, 4 * H), jnp.float32, -bound, bound)

    w_v, b_v = linear(keys[ki], H, 1); ki += 1
    w_a, b_a = linear(keys[ki], H, 2 * action_size); ki += 1

    return {"ff": ff, "w_ih": w_ih, "b_ih": b_ih, "w_hh": w_hh, "b_hh": b_hh,
            "w_v": w_v, "b_v": b_v, "w_a": w_a, "b_a": b_a}


def reference_forward(x, hidden, params, action_size):
    """Pure-JAX reference for correctness checking (uses logical params)."""
    h0, c0 = hidden
    n_ff = len(params["ff"])
    for li, (w, b) in enumerate(params["ff"]):
        x = x @ w + b
        if li < n_ff - 1:
            x = jnp.maximum(x, 0.0)
    gates = x @ params["w_ih"] + params["b_ih"] + h0 @ params["w_hh"] + params["b_hh"]
    H = h0.shape[1]
    i_g = jax.nn.sigmoid(gates[:, 0 * H:1 * H])
    f_g = jax.nn.sigmoid(gates[:, 1 * H:2 * H])
    g_g = jnp.tanh(gates[:, 2 * H:3 * H])
    o_g = jax.nn.sigmoid(gates[:, 3 * H:4 * H])
    c = f_g * c0 + i_g * g_g
    h = o_g * jnp.tanh(c)
    value = h @ params["w_v"] + params["b_v"]
    action = h @ params["w_a"] + params["b_a"]
    return h, c, value, action[:, :action_size], action[:, action_size:]


if __name__ == "__main__":
    input_size = 32
    action_size = 4
    ff_size = [64, 32, 32]   # ff_size[-2] == ff_size[-1] so ff output feeds LSTMCell
    batch = 2

    forward, pack_params, ff_dims = make_lstm_model4(
        input_size, action_size, ff_size, param_dtype=jnp.float32)

    key = jax.random.PRNGKey(0)
    k_params, k_x = jax.random.split(key)
    params = init_params(k_params, input_size, action_size, ff_size, ff_dims)

    x = jax.random.normal(k_x, (batch, input_size), jnp.float32)
    # init_hidden(batch) -> zeros
    h0 = jnp.zeros((batch, ff_size[-1]), jnp.float32)
    c0 = jnp.zeros((batch, ff_size[-1]), jnp.float32)

    # --- f32 weights: strict check against pure-JAX reference ---------------
    packed_f32 = pack_params(params)                   # default param_dtype=f32
    out = forward(x, (h0, c0), packed_f32)
    out = jax.block_until_ready(out)

    h_ref, c_ref, v_ref, am_ref, al_ref = reference_forward(
        x, (h0, c0), params, action_size)
    assert jnp.allclose(out["hidden"][0], h_ref, atol=1e-5, rtol=1e-5)
    assert jnp.allclose(out["hidden"][1], c_ref, atol=1e-5, rtol=1e-5)
    assert jnp.allclose(out["value"], v_ref, atol=1e-5, rtol=1e-5)
    assert jnp.allclose(out["action_mean"], am_ref, atol=1e-5, rtol=1e-5)
    assert jnp.allclose(out["action_logstd"], al_ref, atol=1e-5, rtol=1e-5)

    # --- bf16 weights (recommended on v6e/v7x): f32 accumulation kept --------
    packed_bf16 = pack_params(params, dtype=jnp.bfloat16)
    out_bf16 = forward(x, (h0, c0), packed_bf16)
    out_bf16 = jax.block_until_ready(out_bf16)
    assert jnp.allclose(out_bf16["hidden"][0], h_ref, atol=5e-2, rtol=5e-2)
    assert jnp.allclose(out_bf16["hidden"][1], c_ref, atol=5e-2, rtol=5e-2)
    assert jnp.allclose(out_bf16["value"], v_ref, atol=5e-2, rtol=5e-2)
    assert jnp.allclose(out_bf16["action_mean"], am_ref, atol=5e-2, rtol=5e-2)
    assert jnp.allclose(out_bf16["action_logstd"], al_ref, atol=5e-2, rtol=5e-2)

    print("KERNEL_OK")
</pallas_src>

<mosaic_0001>
module attributes {stable_mosaic.version = 11 : i64} {
  func.func @kernel(%arg0: i32, %arg1: memref<8x128xf32, #tpu.memory_space<vmem>>, %arg2: memref<128x128xf32, #tpu.memory_space<vmem>>, %arg3: memref<1x128xf32, #tpu.memory_space<vmem>>, %arg4: memref<128x128xf32, #tpu.memory_space<vmem>>, %arg5: memref<1x128xf32, #tpu.memory_space<vmem>>, %arg6: memref<128x128xf32, #tpu.memory_space<vmem>>, %arg7: memref<128x128xf32, #tpu.memory_space<vmem>>, %arg8: memref<1x128xf32, #tpu.memory_space<vmem>>, %arg9: memref<8x128xf32, #tpu.memory_space<vmem>>, %arg10: memref<8x128xf32, #tpu.memory_space<vmem>>, %arg11: memref<32x128xf32, #tpu.memory_space<vmem>>, %arg12: memref<1x128xf32, #tpu.memory_space<vmem>>, %arg13: memref<8x384xf32, #tpu.memory_space<vmem>>) attributes {dimension_semantics = [#tpu.dimension_semantics<parallel>], iteration_bounds = array<i64: 1>, scalar_prefetch = 0 : i64, scratch_operands = 0 : i64, tpu.core_type = #tpu.core_type<tc>, window_params = [{transform_indices = @transform_0, window_bounds = array<i64: 8, 128>}, {pipeline_mode = #tpu.pipeline_mode<synchronous>, transform_indices = @transform_1, window_bounds = array<i64: 128, 128>}, {pipeline_mode = #tpu.pipeline_mode<synchronous>, transform_indices = @transform_2, window_bounds = array<i64: 1, 128>}, {pipeline_mode = #tpu.pipeline_mode<synchronous>, transform_indices = @transform_3, window_bounds = array<i64: 128, 128>}, {pipeline_mode = #tpu.pipeline_mode<synchronous>, transform_indices = @transform_4, window_bounds = array<i64: 1, 128>}, {pipeline_mode = #tpu.pipeline_mode<synchronous>, transform_indices = @transform_5, window_bounds = array<i64: 128, 128>}, {pipeline_mode = #tpu.pipeline_mode<synchronous>, transform_indices = @transform_6, window_bounds = array<i64: 128, 128>}, {pipeline_mode = #tpu.pipeline_mode<synchronous>, transform_indices = @transform_7, window_bounds = array<i64: 1, 128>}, {transform_indices = @transform_8, window_bounds = array<i64: 8, 128>}, {transform_indices = @transform_9, window_bounds = array<i64: 8, 128>}, {pipeline_mode = #tpu.pipeline_mode<synchronous>, transform_indices = @transform_10, window_bounds = array<i64: 32, 128>}, {pipeline_mode = #tpu.pipeline_mode<synchronous>, transform_indices = @transform_11, window_bounds = array<i64: 1, 128>}, {transform_indices = @transform_12, window_bounds = array<i64: 8, 384>}]} {
    %c0 = arith.constant 0 : index
    %c0_0 = arith.constant 0 : index
    %0 = vector.load %arg1[%c0, %c0_0] : memref<8x128xf32, #tpu.memory_space<vmem>>, vector<8x128xf32>
    %c0_1 = arith.constant 0 : index
    %c0_2 = arith.constant 0 : index
    %1 = vector.load %arg2[%c0_1, %c0_2] : memref<128x128xf32, #tpu.memory_space<vmem>>, vector<128x128xf32>
    %cst = arith.constant dense<0.000000e+00> : vector<8x128xf32>
    %2 = tpu.matmul %0, %1, %cst {dimension_numbers = #tpu.dot_dimension_numbers<[1], [0], [0], [1], [0, 0, 1, 1], [], []>} : vector<8x128xf32>, vector<128x128xf32>, vector<8x128xf32> -> vector<8x128xf32>
    %c0_3 = arith.constant 0 : index
    %c0_4 = arith.constant 0 : index
    %3 = vector.load %arg3[%c0_3, %c0_4] : memref<1x128xf32, #tpu.memory_space<vmem>>, vector<1x128xf32>
    %4 = vector.broadcast %3 : vector<1x128xf32> to vector<8x128xf32>
    %5 = arith.addf %2, %4 : vector<8x128xf32>
    %cst_5 = arith.constant 0.000000e+00 : f32
    %6 = vector.broadcast %cst_5 : f32 to vector<8x128xf32>
    %7 = arith.maximumf %5, %6 : vector<8x128xf32>
    %c0_6 = arith.constant 0 : index
    %c0_7 = arith.constant 0 : index
    %8 = vector.load %arg4[%c0_6, %c0_7] : memref<128x128xf32, #tpu.memory_space<vmem>>, vector<128x128xf32>
    %cst_8 = arith.constant dense<0.000000e+00> : vector<8x128xf32>
    %9 = tpu.matmul %7, %8, %cst_8 {dimension_numbers = #tpu.dot_dimension_numbers<[1], [0], [0], [1], [0, 0, 1, 1], [], []>} : vector<8x128xf32>, vector<128x128xf32>, vector<8x128xf32> -> vector<8x128xf32>
    %c0_9 = arith.constant 0 : index
    %c0_10 = arith.constant 0 : index
    %10 = vector.load %arg5[%c0_9, %c0_10] : memref<1x128xf32, #tpu.memory_space<vmem>>, vector<1x128xf32>
    %11 = vector.broadcast %10 : vector<1x128xf32> to vector<8x128xf32>
    %12 = arith.addf %9, %11 : vector<8x128xf32>
    %c0_11 = arith.constant 0 : index
    %c0_12 = arith.constant 0 : index
    %13 = vector.load %arg6[%c0_11, %c0_12] : memref<128x128xf32, #tpu.memory_space<vmem>>, vector<128x128xf32>
    %c0_13 = arith.constant 0 : index
    %c0_14 = arith.constant 0 : index
    %14 = vector.load %arg7[%c0_13, %c0_14] : memref<128x128xf32, #tpu.memory_space<vmem>>, vector<128x128xf32>
    %c0_15 = arith.constant 0 : index
    %c0_16 = arith.constant 0 : index
    %15 = vector.load %arg9[%c0_15, %c0_16] : memref<8x128xf32, #tpu.memory_space<vmem>>, vector<8x128xf32>
    %cst_17 = arith.constant dense<0.000000e+00> : vector<8x128xf32>
    %16 = tpu.matmul %12, %13, %cst_17 {dimension_numbers = #tpu.dot_dimension_numbers<[1], [0], [0], [1], [0, 0, 1, 1], [], []>} : vector<8x128xf32>, vector<128x128xf32>, vector<8x128xf32> -> vector<8x128xf32>
    %cst_18 = arith.constant dense<0.000000e+00> : vector<8x128xf32>
    %17 = tpu.matmul %15, %14, %cst_18 {dimension_numbers = #tpu.dot_dimension_numbers<[1], [0], [0], [1], [0, 0, 1, 1], [], []>} : vector<8x128xf32>, vector<128x128xf32>, vector<8x128xf32> -> vector<8x128xf32>
    %18 = arith.addf %16, %17 : vector<8x128xf32>
    %c0_19 = arith.constant 0 : index
    %c0_20 = arith.constant 0 : index
    %19 = vector.load %arg8[%c0_19, %c0_20] : memref<1x128xf32, #tpu.memory_space<vmem>>, vector<1x128xf32>
    %20 = vector.broadcast %19 : vector<1x128xf32> to vector<8x128xf32>
    %21 = arith.addf %18, %20 : vector<8x128xf32>
    %22 = vector.extract_strided_slice %21 {offsets = [0, 0], sizes = [8, 32], strides = [1, 1]} : vector<8x128xf32> to vector<8x32xf32>
    %23 = arith.negf %22 : vector<8x32xf32>
    %24 = math.exp %23 : vector<8x32xf32>
    %cst_21 = arith.constant 1.000000e+00 : f32
    %25 = vector.broadcast %cst_21 : f32 to vector<8x32xf32>
    %26 = arith.addf %25, %24 : vector<8x32xf32>
    %27 = arith.divf %25, %26 : vector<8x32xf32>
    %28 = vector.extract_strided_slice %21 {offsets = [0, 32], sizes = [8, 32], strides = [1, 1]} : vector<8x128xf32> to vector<8x32xf32>
    %29 = arith.negf %28 : vector<8x32xf32>
    %30 = math.exp %29 : vector<8x32xf32>
    %cst_22 = arith.constant 1.000000e+00 : f32
    %31 = vector.broadcast %cst_22 : f32 to vector<8x32xf32>
    %32 = arith.addf %31, %30 : vector<8x32xf32>
    %33 = arith.divf %31, %32 : vector<8x32xf32>
    %34 = vector.extract_strided_slice %21 {offsets = [0, 64], sizes = [8, 32], strides = [1, 1]} : vector<8x128xf32> to vector<8x32xf32>
    %35 = math.tanh %34 : vector<8x32xf32>
    %36 = vector.extract_strided_slice %21 {offsets = [0, 96], sizes = [8, 32], strides = [1, 1]} : vector<8x128xf32> to vector<8x32xf32>
    %37 = arith.negf %36 : vector<8x32xf32>
    %38 = math.exp %37 : vector<8x32xf32>
    %cst_23 = arith.constant 1.000000e+00 : f32
    %39 = vector.broadcast %cst_23 : f32 to vector<8x32xf32>
    %40 = arith.addf %39, %38 : vector<8x32xf32>
    %41 = arith.divf %39, %40 : vector<8x32xf32>
    %c0_24 = arith.constant 0 : index
    %c0_25 = arith.constant 0 : index
    %42 = vector.load %arg10[%c0_24, %c0_25] : memref<8x128xf32, #tpu.memory_space<vmem>>, vector<8x128xf32>
    %43 = vector.extract_strided_slice %42 {offsets = [0, 0], sizes = [8, 32], strides = [1, 1]} : vector<8x128xf32> to vector<8x32xf32>
    %44 = arith.mulf %33, %43 : vector<8x32xf32>
    %45 = arith.mulf %27, %35 : vector<8x32xf32>
    %46 = arith.addf %44, %45 : vector<8x32xf32>
    %47 = math.tanh %46 : vector<8x32xf32>
    %48 = arith.mulf %41, %47 : vector<8x32xf32>
    %c0_26 = arith.constant 0 : index
    %c0_27 = arith.constant 0 : index
    %49 = vector.load %arg11[%c0_26, %c0_27] : memref<32x128xf32, #tpu.memory_space<vmem>>, vector<32x128xf32>
    %cst_28 = arith.constant dense<0.000000e+00> : vector<8x128xf32>
    %50 = tpu.matmul %48, %49, %cst_28 {dimension_numbers = #tpu.dot_dimension_numbers<[1], [0], [0], [1], [0, 0, 1, 1], [], []>} : vector<8x32xf32>, vector<32x128xf32>, vector<8x128xf32> -> vector<8x128xf32>
    %c0_29 = arith.constant 0 : index
    %c0_30 = arith.constant 0 : index
    %51 = vector.load %arg12[%c0_29, %c0_30] : memref<1x128xf32, #tpu.memory_space<vmem>>, vector<1x128xf32>
    %52 = vector.broadcast %51 : vector<1x128xf32> to vector<8x128xf32>
    %53 = arith.addf %50, %52 : vector<8x128xf32>
    %c0_31 = arith.constant 0 : index
    %c0_32 = arith.constant 0 : index
    %54 = vector.load %arg13[%c0_31, %c0_32] : memref<8x384xf32, #tpu.memory_space<vmem>>, vector<8x32xf32>
    tpu.vector_store %arg13[%c0_31, %c0_32], %48 {strides = array<i32>} : memref<8x384xf32, #tpu.memory_space<vmem>>, vector<8x32xf32>,
    %c0_33 = arith.constant 0 : index
    %c128 = arith.constant 128 : index
    %55 = vector.load %arg13[%c0_33, %c128] : memref<8x384xf32, #tpu.memory_space<vmem>>, vector<8x32xf32>
    tpu.vector_store %arg13[%c0_33, %c128], %46 {strides = array<i32>} : memref<8x384xf32, #tpu.memory_space<vmem>>, vector<8x32xf32>,
    %c0_34 = arith.constant 0 : index
    %c256 = arith.constant 256 : index
    %56 = vector.load %arg13[%c0_34, %c256] : memref<8x384xf32, #tpu.memory_space<vmem>>, vector<8x128xf32>
    tpu.vector_store %arg13[%c0_34, %c256], %53 {strides = array<i32>} : memref<8x384xf32, #tpu.memory_space<vmem>>, vector<8x128xf32>,
    return
  }
  func.func @transform_0(%arg0: i32) -> (i32, i32) {
    %c0_i32 = arith.constant 0 : i32
    %c0_i32_0 = arith.constant 0 : i32
    return %arg0, %c0_i32 : i32, i32
  }
  func.func @transform_1(%arg0: i32) -> (i32, i32) {
    %c0_i32 = arith.constant 0 : i32
    %c0_i32_0 = arith.constant 0 : i32
    %c0_i32_1 = arith.constant 0 : i32
    return %c0_i32, %c0_i32_0 : i32, i32
  }
  func.func @transform_2(%arg0: i32) -> (i32, i32) {
    %c0_i32 = arith.constant 0 : i32
    %c0_i32_0 = arith.constant 0 : i32
    %c0_i32_1 = arith.constant 0 : i32
    return %c0_i32, %c0_i32_0 : i32, i32
  }
  func.func @transform_3(%arg0: i32) -> (i32, i32) {
    %c0_i32 = arith.constant 0 : i32
    %c0_i32_0 = arith.constant 0 : i32
    %c0_i32_1 = arith.constant 0 : i32
    return %c0_i32, %c0_i32_0 : i32, i32
  }
  func.func @transform_4(%arg0: i32) -> (i32, i32) {
    %c0_i32 = arith.constant 0 : i32
    %c0_i32_0 = arith.constant 0 : i32
    %c0_i32_1 = arith.constant 0 : i32
    return %c0_i32, %c0_i32_0 : i32, i32
  }
  func.func @transform_5(%arg0: i32) -> (i32, i32) {
    %c0_i32 = arith.constant 0 : i32
    %c0_i32_0 = arith.constant 0 : i32
    %c0_i32_1 = arith.constant 0 : i32
    return %c0_i32, %c0_i32_0 : i32, i32
  }
  func.func @transform_6(%arg0: i32) -> (i32, i32) {
    %c0_i32 = arith.constant 0 : i32
    %c0_i32_0 = arith.constant 0 : i32
    %c0_i32_1 = arith.constant 0 : i32
    return %c0_i32, %c0_i32_0 : i32, i32
  }
  func.func @transform_7(%arg0: i32) -> (i32, i32) {
    %c0_i32 = arith.constant 0 : i32
    %c0_i32_0 = arith.constant 0 : i32
    %c0_i32_1 = arith.constant 0 : i32
    return %c0_i32, %c0_i32_0 : i32, i32
  }
  func.func @transform_8(%arg0: i32) -> (i32, i32) {
    %c0_i32 = arith.constant 0 : i32
    %c0_i32_0 = arith.constant 0 : i32
    return %arg0, %c0_i32 : i32, i32
  }
  func.func @transform_9(%arg0: i32) -> (i32, i32) {
    %c0_i32 = arith.constant 0 : i32
    %c0_i32_0 = arith.constant 0 : i32
    return %arg0, %c0_i32 : i32, i32
  }
  func.func @transform_10(%arg0: i32) -> (i32, i32) {
    %c0_i32 = arith.constant 0 : i32
    %c0_i32_0 = arith.constant 0 : i32
    %c0_i32_1 = arith.constant 0 : i32
    return %c0_i32, %c0_i32_0 : i32, i32
  }
  func.func @transform_11(%arg0: i32) -> (i32, i32) {
    %c0_i32 = arith.constant 0 : i32
    %c0_i32_0 = arith.constant 0 : i32
    %c0_i32_1 = arith.constant 0 : i32
    return %c0_i32, %c0_i32_0 : i32, i32
  }
  func.func @transform_12(%arg0: i32) -> (i32, i32) {
    %c0_i32 = arith.constant 0 : i32
    %c0_i32_0 = arith.constant 0 : i32
    return %arg0, %c0_i32 : i32, i32
  }
}

</mosaic_0001>

<llo_original>
// kernel: tpu_custom_call.1
$region0: #{tpu_custom_call.1}
  #allocation0 [shape = 'u32[]', space=smem, size = 0x4, offset = 0x4, fixed_abs, tag = 'smem constant byte address 0x4 - core index']
  #allocation1 [shape = 'u32[144,128]{1,0:T(1,128)}', space=vmem, size = 0x12000, scoped, tag = 'internal scratch']
  %s0 = inlined_call_operand.hbm [shape: f32[8,128], index: 0, kind: input, shape index: {}]
  %s1 = inlined_call_operand.hbm [shape: f32[128,128], index: 1, kind: input, shape index: {}]
  %s2 = inlined_call_operand.hbm [shape: f32[1,128], index: 2, kind: input, shape index: {}]
  %s3 = inlined_call_operand.hbm [shape: f32[128,128], index: 3, kind: input, shape index: {}]
  %s4 = inlined_call_operand.hbm [shape: f32[1,128], index: 4, kind: input, shape index: {}]
  %s5 = inlined_call_operand.hbm [shape: f32[128,128], index: 5, kind: input, shape index: {}]
  %s6 = inlined_call_operand.hbm [shape: f32[128,128], index: 6, kind: input, shape index: {}]
  %s7 = inlined_call_operand.hbm [shape: f32[1,128], index: 7, kind: input, shape index: {}]
  %s8 = inlined_call_operand.vmem [shape: f32[8,128], index: 8, kind: input, shape index: {}]
  %s9 = inlined_call_operand.vmem [shape: f32[8,128], index: 9, kind: input, shape index: {}]
  %s10 = inlined_call_operand.hbm [shape: f32[32,128], index: 10, kind: input, shape index: {}]
  %s11 = inlined_call_operand.vmem [shape: f32[1,128], index: 11, kind: input, shape index: {}]
  %s12 = inlined_call_operand.hbm [shape: f32[8,384], index: 12, kind: output, shape index: {}]
  %s13 = sld [smem:[#allocation0]]
  $region94: #{tpu_custom_call.1} parent=0
    _
  %s15 = ssub.s32 1, %s13
  %s16 = scalar_select 0, %s15, %s13
  $region1: #{tpu_custom_call.1} parent=0
    #allocation2 [shape = 'u8[4096]{0}', space=vmem, size = 0x1000, scoped, tag = 'input window, operand 0, single buffered']
    #allocation3 [shape = 's32[1]{0}', space=sflag, size = 0x4, scoped, tag = 'scoped memory for tpu_custom_call.1']
    #allocation4 [shape = 's32[1]{0}', space=sflag, size = 0x4, scoped, tag = 'scoped memory for tpu_custom_call.1']
    #allocation5 [shape = 'u8[65536]{0}', space=vmem, size = 0x10000, scoped, tag = 'input window, operand 1, single buffered']
    #allocation6 [shape = 's32[1]{0}', space=sflag, size = 0x4, scoped, tag = 'scoped memory for tpu_custom_call.1']
    #allocation7 [shape = 'u8[512]{0}', space=vmem, size = 0x400, scoped, tag = 'input window, operand 2, single buffered']
    #allocation8 [shape = 'u8[65536]{0}', space=vmem, size = 0x10000, scoped, tag = 'input window, operand 3, single buffered']
    #allocation9 [shape = 's32[1]{0}', space=sflag, size = 0x4, scoped, tag = 'scoped memory for tpu_custom_call.1']
    #allocation10 [shape = 'u8[512]{0}', space=vmem, size = 0x400, scoped, tag = 'input window, operand 4, single buffered']
    #allocation11 [shape = 'u8[65536]{0}', space=vmem, size = 0x10000, scoped, tag = 'input window, operand 5, single buffered']
    #allocation12 [shape = 's32[1]{0}', space=sflag, size = 0x4, scoped, tag = 'scoped memory for tpu_custom_call.1']
    #allocation13 [shape = 'u8[65536]{0}', space=vmem, size = 0x10000, scoped, tag = 'input window, operand 6, single buffered']
    #allocation14 [shape = 'u8[512]{0}', space=vmem, size = 0x400, scoped, tag = 'input window, operand 7, single buffered']
    #allocation15 [shape = 's32[1]{0}', space=sflag, size = 0x4, scoped, tag = 'scoped memory for tpu_custom_call.1']
    #allocation16 [shape = 'u8[16384]{0}', space=vmem, size = 0x4000, scoped, tag = 'input window, operand 10, single buffered']
    #allocation17 [shape = 'u8[12288]{0}', space=vmem, size = 0x3000, scoped, tag = 'output window, operand 0, single buffered']
    %17 = vsyncpa [#allocation3], 0
    %18 = vsyncpa [#allocation6], 0
    %19 = vsyncpa [#allocation9], 0
    %20 = vsyncpa [#allocation12], 0
    %21 = vsyncpa [#allocation15], 0
    %22 = vsyncpa [#allocation4], 0
    // Predicated region
    $region2: #{tpu_custom_call.1} parent=1 // pred_check
      _
    $region3: #{tpu_custom_call.1} parent=1 // pred_check_branch
      %24 = sbr.rel (0) target = $region5
    $region4: #{tpu_custom_call.1} parent=1 // pred_region
      %s26 = ssub.s32 128, 128
      %27 = vsyncadd [#allocation3], %s26
      %s29 = sshll.u32 [#allocation2], 4
      %s30 = int_to_ptr.vmem [resolvable:$true] %s29
      %32 = dma.hbm_to_vmem [thread:$0]  %s0, 128, %s30, [#allocation3]
    $region5: #{tpu_custom_call.1} parent=1 // pred_fallthru
      _
    // Predicated region
    $region6: #{tpu_custom_call.1} parent=1 // pred_check
      _
    $region7: #{tpu_custom_call.1} parent=1 // pred_check_branch
      %34 = sbr.rel (0) target = $region9
    $region8: #{tpu_custom_call.1} parent=1 // pred_region
      %s36 = ssub.s32 2048, 2048
      %37 = vsyncadd [#allocation6], %s36
      %s38 = sshll.u32 [#allocation5], 4
      %s39 = int_to_ptr.vmem [resolvable:$true] %s38
      %44 = dma.hbm_to_vmem [thread:$0]  %s1, 2048, %s39, [#allocation6], 128, 128, 8
    $region9: #{tpu_custom_call.1} parent=1 // pred_fallthru
      _
    // Predicated region
    $region10: #{tpu_custom_call.1} parent=1 // pred_check
      _
    $region11: #{tpu_custom_call.1} parent=1 // pred_check_branch
      %46 = sbr.rel (0) target = $region13
    $region12: #{tpu_custom_call.1} parent=1 // pred_region
      %s48 = ssub.s32 16, 16
      %49 = vsyncadd [#allocation6], %s48
      %s51 = sshll.u32 [#allocation7], 4
      %s52 = int_to_ptr.vmem [resolvable:$true] %s51
      %54 = dma.hbm_to_vmem [thread:$0]  %s2, 16, %s52, [#allocation6]
    $region13: #{tpu_custom_call.1} parent=1 // pred_fallthru
      _
    // Predicated region
    $region14: #{tpu_custom_call.1} parent=1 // pred_check
      _
    $region15: #{tpu_custom_call.1} parent=1 // pred_check_branch
      %56 = sbr.rel (0) target = $region17
    $region16: #{tpu_custom_call.1} parent=1 // pred_region
      %s58 = ssub.s32 2048, 2048
      %59 = vsyncadd [#allocation9], %s58
      %s60 = sshll.u32 [#allocation8], 4
      %s61 = int_to_ptr.vmem [resolvable:$true] %s60
      %66 = dma.hbm_to_vmem [thread:$0]  %s3, 2048, %s61, [#allocation9], 128, 128, 8
    $region17: #{tpu_custom_call.1} parent=1 // pred_fallthru
      _
    // Predicated region
    $region18: #{tpu_custom_call.1} parent=1 // pred_check
      _
    $region19: #{tpu_custom_call.1} parent=1 // pred_check_branch
      %68 = sbr.rel (0) target = $region21
    $region20: #{tpu_custom_call.1} parent=1 // pred_region
      %s70 = ssub.s32 16, 16
      %71 = vsyncadd [#allocation9], %s70
      %s73 = sshll.u32 [#allocation10], 4
      %s74 = int_to_ptr.vmem [resolvable:$true] %s73
      %76 = dma.hbm_to_vmem [thread:$0]  %s4, 16, %s74, [#allocation9]
    $region21: #{tpu_custom_call.1} parent=1 // pred_fallthru
      _
    // Predicated region
    $region22: #{tpu_custom_call.1} parent=1 // pred_check
      _
    $region23: #{tpu_custom_call.1} parent=1 // pred_check_branch
      %78 = sbr.rel (0) target = $region25
    $region24: #{tpu_custom_call.1} parent=1 // pred_region
      %s80 = ssub.s32 2048, 2048
      %81 = vsyncadd [#allocation12], %s80
      %s82 = sshll.u32 [#allocation11], 4
      %s83 = int_to_ptr.vmem [resolvable:$true] %s82
      %88 = dma.hbm_to_vmem [thread:$0]  %s5, 2048, %s83, [#allocation12], 128, 128, 8
    $region25: #{tpu_custom_call.1} parent=1 // pred_fallthru
      _
    // Predicated region
    $region26: #{tpu_custom_call.1} parent=1 // pred_check
      _
    $region27: #{tpu_custom_call.1} parent=1 // pred_check_branch
      %90 = sbr.rel (0) target = $region29
    $region28: #{tpu_custom_call.1} parent=1 // pred_region
      %s92 = ssub.s32 2048, 2048
      %93 = vsyncadd [#allocation12], %s92
      %s94 = sshll.u32 [#allocation13], 4
      %s95 = int_to_ptr.vmem [resolvable:$true] %s94
      %100 = dma.hbm_to_vmem [thread:$0]  %s6, 2048, %s95, [#allocation12], 128, 128, 8
    $region29: #{tpu_custom_call.1} parent=1 // pred_fallthru
      _
    // Predicated region
    $region30: #{tpu_custom_call.1} parent=1 // pred_check
      _
    $region31: #{tpu_custom_call.1} parent=1 // pred_check_branch
      %102 = sbr.rel (0) target = $region33
    $region32: #{tpu_custom_call.1} parent=1 // pred_region
      %s104 = ssub.s32 16, 16
      %105 = vsyncadd [#allocation15], %s104
      %s107 = sshll.u32 [#allocation14], 4
      %s108 = int_to_ptr.vmem [resolvable:$true] %s107
      %110 = dma.hbm_to_vmem [thread:$0]  %s7, 16, %s108, [#allocation15]
    $region33: #{tpu_custom_call.1} parent=1 // pred_fallthru
      _
    // Predicated region
    $region34: #{tpu_custom_call.1} parent=1 // pred_check
      _
    $region35: #{tpu_custom_call.1} parent=1 // pred_check_branch
      %112 = sbr.rel (0) target = $region37
    $region36: #{tpu_custom_call.1} parent=1 // pred_region
      _
    $region37: #{tpu_custom_call.1} parent=1 // pred_fallthru
      _
    // Predicated region
    $region38: #{tpu_custom_call.1} parent=1 // pred_check
      _
    $region39: #{tpu_custom_call.1} parent=1 // pred_check_branch
      %114 = sbr.rel (0) target = $region41
    $region40: #{tpu_custom_call.1} parent=1 // pred_region
      _
    $region41: #{tpu_custom_call.1} parent=1 // pred_fallthru
      _
    // Predicated region
    $region42: #{tpu_custom_call.1} parent=1 // pred_check
      _
    $region43: #{tpu_custom_call.1} parent=1 // pred_check_branch
      %116 = sbr.rel (0) target = $region45
    $region44: #{tpu_custom_call.1} parent=1 // pred_region
      %s118 = ssub.s32 512, 512
      %119 = vsyncadd [#allocation15], %s118
      %s120 = sshll.u32 [#allocation16], 4
      %s121 = int_to_ptr.vmem [resolvable:$true] %s120
      %126 = dma.hbm_to_vmem [thread:$0]  %s10, 512, %s121, [#allocation15], 128, 128, 8
    $region45: #{tpu_custom_call.1} parent=1 // pred_fallthru
      _
    // Predicated region
    $region46: #{tpu_custom_call.1} parent=1 // pred_check
      _
    $region47: #{tpu_custom_call.1} parent=1 // pred_check_branch
      %128 = sbr.rel (0) target = $region49
    $region48: #{tpu_custom_call.1} parent=1 // pred_region
      _
    $region49: #{tpu_custom_call.1} parent=1 // pred_fallthru
      _
    // Predicated region
    $region50: #{tpu_custom_call.1} parent=1 // pred_check
      _
    $region51: #{tpu_custom_call.1} parent=1 // pred_check_branch
      %130 = sbr.rel (0) target = $region53
    $region52: #{tpu_custom_call.1} parent=1 // pred_region
      %131 = dma.done [#allocation3], 128
    $region53: #{tpu_custom_call.1} parent=1 // pred_fallthru
      _
    // Predicated region
    $region54: #{tpu_custom_call.1} parent=1 // pred_check
      _
    $region55: #{tpu_custom_call.1} parent=1 // pred_check_branch
      %133 = sbr.rel (0) target = $region57
    $region56: #{tpu_custom_call.1} parent=1 // pred_region
      %134 = dma.done [#allocation6], 2048
    $region57: #{tpu_custom_call.1} parent=1 // pred_fallthru
      _
    // Predicated region
    $region58: #{tpu_custom_call.1} parent=1 // pred_check
      _
    $region59: #{tpu_custom_call.1} parent=1 // pred_check_branch
      %136 = sbr.rel (0) target = $region61
    $region60: #{tpu_custom_call.1} parent=1 // pred_region
      %137 = dma.done [#allocation6], 16
    $region61: #{tpu_custom_call.1} parent=1 // pred_fallthru
      _
    // Predicated region
    $region62: #{tpu_custom_call.1} parent=1 // pred_check
      _
    $region63: #{tpu_custom_call.1} parent=1 // pred_check_branch
      %139 = sbr.rel (0) target = $region65
    $region64: #{tpu_custom_call.1} parent=1 // pred_region
      %140 = dma.done [#allocation9], 2048
    $region65: #{tpu_custom_call.1} parent=1 // pred_fallthru
      _
    // Predicated region
    $region66: #{tpu_custom_call.1} parent=1 // pred_check
      _
    $region67: #{tpu_custom_call.1} parent=1 // pred_check_branch
      %142 = sbr.rel (0) target = $region69
    $region68: #{tpu_custom_call.1} parent=1 // pred_region
      %143 = dma.done [#allocation9], 16
    $region69: #{tpu_custom_call.1} parent=1 // pred_fallthru
      _
    // Predicated region
    $region70: #{tpu_custom_call.1} parent=1 // pred_check
      _
    $region71: #{tpu_custom_call.1} parent=1 // pred_check_branch
      %145 = sbr.rel (0) target = $region73
    $region72: #{tpu_custom_call.1} parent=1 // pred_region
      %146 = dma.done [#allocation12], 2048
    $region73: #{tpu_custom_call.1} parent=1 // pred_fallthru
      _
    // Predicated region
    $region74: #{tpu_custom_call.1} parent=1 // pred_check
      _
    $region75: #{tpu_custom_call.1} parent=1 // pred_check_branch
      %148 = sbr.rel (0) target = $region77
    $region76: #{tpu_custom_call.1} parent=1 // pred_region
      %149 = dma.done [#allocation12], 2048
    $region77: #{tpu_custom_call.1} parent=1 // pred_fallthru
      _
    // Predicated region
    $region78: #{tpu_custom_call.1} parent=1 // pred_check
      _
    $region79: #{tpu_custom_call.1} parent=1 // pred_check_branch
      %151 = sbr.rel (0) target = $region81
    $region80: #{tpu_custom_call.1} parent=1 // pred_region
      %152 = dma.done [#allocation15], 16
    $region81: #{tpu_custom_call.1} parent=1 // pred_fallthru
      _
    // Predicated region
    $region82: #{tpu_custom_call.1} parent=1 // pred_check
      _
    $region83: #{tpu_custom_call.1} parent=1 // pred_check_branch
      %154 = sbr.rel (0) target = $region85
    $region84: #{tpu_custom_call.1} parent=1 // pred_region
      %155 = dma.done [#allocation15], 512
    $region85: #{tpu_custom_call.1} parent=1 // pred_fallthru
      _
    %v156 = vld [vmem:[#allocation2] sm:$0xff]
    %v157 = vld [vmem:[#allocation5] sm:$0xff]
    %v158 = vld [vmem:[#allocation5 + $0x8] sm:$0xff]
    %v159 = vld [vmem:[#allocation5 + $0x10] sm:$0xff]
    %v160 = vld [vmem:[#allocation5 + $0x18] sm:$0xff]
    %v161 = vld [vmem:[#allocation5 + $0x20] sm:$0xff]
    %v162 = vld [vmem:[#allocation5 + $0x28] sm:$0xff]
    %v163 = vld [vmem:[#allocation5 + $0x30] sm:$0xff]
    %v164 = vld [vmem:[#allocation5 + $0x38] sm:$0xff]
    %v165 = vld [vmem:[#allocation5 + $0x40] sm:$0xff]
    %v166 = vld [vmem:[#allocation5 + $0x48] sm:$0xff]
    %v167 = vld [vmem:[#allocation5 + $0x50] sm:$0xff]
    %v168 = vld [vmem:[#allocation5 + $0x58] sm:$0xff]
    %v169 = vld [vmem:[#allocation5 + $0x60] sm:$0xff]
    %v170 = vld [vmem:[#allocation5 + $0x68] sm:$0xff]
    %v171 = vld [vmem:[#allocation5 + $0x70] sm:$0xff]
    %v172 = vld [vmem:[#allocation5 + $0x78] sm:$0xff]
    %v173 = vld [vmem:[#allocation7] sm:$0x1]
    %v175 = vlaneseq
    %v176 = vshrl.u32 %v175, 7
    %v177 = vsub.s32 0, %v176
    %v178 = vrot.slane %v173, %v177
    %180 = vmatprep.subr.mxu0 0.0
    %181 = vmatpush1.msra.mxu0 %v172
    %182 = vmatprep.subr.mxu0 0.0
    %183 = vmatpush1.msra.mxu0 %v171
    %184 = vmatprep.subr.mxu0 0.0
    %185 = vmatpush1.msra.mxu0 %v170
    %186 = vmatprep.subr.mxu0 0.0
    %187 = vmatpush1.msra.mxu0 %v169
    %188 = vmatprep.subr.mxu0 0.0
    %189 = vmatpush1.msra.mxu0 %v168
    %190 = vmatprep.subr.mxu0 0.0
    %191 = vmatpush1.msra.mxu0 %v167
    %192 = vmatprep.subr.mxu0 0.0
    %193 = vmatpush1.msra.mxu0 %v166
    %194 = vmatprep.subr.mxu0 0.0
    %195 = vmatpush1.msra.mxu0 %v165
    %196 = vmatprep.subr.mxu0 0.0
    %197 = vmatpush1.msra.mxu0 %v164
    %198 = vmatprep.subr.mxu0 0.0
    %199 = vmatpush1.msra.mxu0 %v163
    %200 = vmatprep.subr.mxu0 0.0
    %201 = vmatpush1.msra.mxu0 %v162
    %202 = vmatprep.subr.mxu0 0.0
    %203 = vmatpush1.msra.mxu0 %v161
    %204 = vmatprep.subr.mxu0 0.0
    %205 = vmatpush1.msra.mxu0 %v160
    %206 = vmatprep.subr.mxu0 0.0
    %207 = vmatpush1.msra.mxu0 %v159
    %208 = vmatprep.subr.mxu0 0.0
    %209 = vmatpush1.msra.mxu0 %v158
    %210 = vmatprep.subr.mxu0 0.0
    %211 = vmatpush1.msra.mxu0 %v157
    %212 = vmatprep.subr.mxu0 0.0
    %213 = vmatpush2.msra.mxu0 0.0
    %214 = vmatprep.subr.mxu0 0.0
    %215 = vmatpush2.msra.mxu0 0.0
    %216 = vmatprep.subr.mxu0 0.0
    %217 = vmatpush2.msra.mxu0 0.0
    %218 = vmatprep.subr.mxu0 0.0
    %219 = vmatpush2.msra.mxu0 0.0
    %220 = vmatprep.subr.mxu0 0.0
    %221 = vmatpush2.msra.mxu0 0.0
    %222 = vmatprep.subr.mxu0 0.0
    %223 = vmatpush2.msra.mxu0 0.0
    %224 = vmatprep.subr.mxu0 0.0
    %225 = vmatpush2.msra.mxu0 0.0
    %226 = vmatprep.subr.mxu0 0.0
    %227 = vmatpush2.msra.mxu0 0.0
    %228 = vmatprep.subr.mxu0 0.0
    %229 = vmatpush2.msra.mxu0 0.0
    %230 = vmatprep.subr.mxu0 0.0
    %231 = vmatpush2.msra.mxu0 0.0
    %232 = vmatprep.subr.mxu0 0.0
    %233 = vmatpush2.msra.mxu0 0.0
    %234 = vmatprep.subr.mxu0 0.0
    %235 = vmatpush2.msra.mxu0 0.0
    %236 = vmatprep.subr.mxu0 0.0
    %237 = vmatpush2.msra.mxu0 0.0
    %238 = vmatprep.subr.mxu0 0.0
    %239 = vmatpush2.msra.mxu0 0.0
    %240 = vmatprep.subr.mxu0 0.0
    %241 = vmatpush2.msra.mxu0 0.0
    %242 = vmatprep.subr.mxu0 0.0
    %243 = vmatpush2.msra.mxu0 0.0
    %244 = vmatprep.mubr.f32.mxu0 0.0
    %245 = vmatmul.mubr.f32.gmra.mxu0 %v156
    %v246 = vpop.f32.mrf.mxu0
    %v247 = vadd.f32 %v178, %v246
    %v248 = vpop.f32.mrf.mxu0
    %249 = vdwg.mxu0
    %v250 = vmax.f32 %v247, 0.0
    %v251 = vld [vmem:[#allocation8] sm:$0xff]
    %v252 = vld [vmem:[#allocation8 + $0x8] sm:$0xff]
    %v253 = vld [vmem:[#allocation8 + $0x10] sm:$0xff]
    %v254 = vld [vmem:[#allocation8 + $0x18] sm:$0xff]
    %v255 = vld [vmem:[#allocation8 + $0x20] sm:$0xff]
    %v256 = vld [vmem:[#allocation8 + $0x28] sm:$0xff]
    %v257 = vld [vmem:[#allocation8 + $0x30] sm:$0xff]
    %v258 = vld [vmem:[#allocation8 + $0x38] sm:$0xff]
    %v259 = vld [vmem:[#allocation8 + $0x40] sm:$0xff]
    %v260 = vld [vmem:[#allocation8 + $0x48] sm:$0xff]
    %v261 = vld [vmem:[#allocation8 + $0x50] sm:$0xff]
    %v262 = vld [vmem:[#allocation8 + $0x58] sm:$0xff]
    %v263 = vld [vmem:[#allocation8 + $0x60] sm:$0xff]
    %v264 = vld [vmem:[#allocation8 + $0x68] sm:$0xff]
    %v265 = vld [vmem:[#allocation8 + $0x70] sm:$0xff]
    %v266 = vld [vmem:[#allocation8 + $0x78] sm:$0xff]
    %v267 = vld [vmem:[#allocation10] sm:$0x1]
    %v269 = vlaneseq
    %v270 = vshrl.u32 %v269, 7
    %v271 = vsub.s32 0, %v270
    %v272 = vrot.slane %v267, %v271
    %274 = vmatprep.subr.mxu0 0.0
    %275 = vmatpush1.msra.mxu0 %v266
    %276 = vmatprep.subr.mxu0 0.0
    %277 = vmatpush1.msra.mxu0 %v265
    %278 = vmatprep.subr.mxu0 0.0
    %279 = vmatpush1.msra.mxu0 %v264
    %280 = vmatprep.subr.mxu0 0.0
    %281 = vmatpush1.msra.mxu0 %v263
    %282 = vmatprep.subr.mxu0 0.0
    %283 = vmatpush1.msra.mxu0 %v262
    %284 = vmatprep.subr.mxu0 0.0
    %285 = vmatpush1.msra.mxu0 %v261
    %286 = vmatprep.subr.mxu0 0.0
    %287 = vmatpush1.msra.mxu0 %v260
    %288 = vmatprep.subr.mxu0 0.0
    %289 = vmatpush1.msra.mxu0 %v259
    %290 = vmatprep.subr.mxu0 0.0
    %291 = vmatpush1.msra.mxu0 %v258
    %292 = vmatprep.subr.mxu0 0.0
    %293 = vmatpush1.msra.mxu0 %v257
    %294 = vmatprep.subr.mxu0 0.0
    %295 = vmatpush1.msra.mxu0 %v256
    %296 = vmatprep.subr.mxu0 0.0
    %297 = vmatpush1.msra.mxu0 %v255
    %298 = vmatprep.subr.mxu0 0.0
    %299 = vmatpush1.msra.mxu0 %v254
    %300 = vmatprep.subr.mxu0 0.0
    %301 = vmatpush1.msra.mxu0 %v253
    %302 = vmatprep.subr.mxu0 0.0
    %303 = vmatpush1.msra.mxu0 %v252
    %304 = vmatprep.subr.mxu0 0.0
    %305 = vmatpush1.msra.mxu0 %v251
    %306 = vmatprep.subr.mxu0 0.0
    %307 = vmatpush2.msra.mxu0 0.0
    %308 = vmatprep.subr.mxu0 0.0
    %309 = vmatpush2.msra.mxu0 0.0
    %310 = vmatprep.subr.mxu0 0.0
    %311 = vmatpush2.msra.mxu0 0.0
    %312 = vmatprep.subr.mxu0 0.0
    %313 = vmatpush2.msra.mxu0 0.0
    %314 = vmatprep.subr.mxu0 0.0
    %315 = vmatpush2.msra.mxu0 0.0
    %316 = vmatprep.subr.mxu0 0.0
    %317 = vmatpush2.msra.mxu0 0.0
    %318 = vmatprep.subr.mxu0 0.0
    %319 = vmatpush2.msra.mxu0 0.0
    %320 = vmatprep.subr.mxu0 0.0
    %321 = vmatpush2.msra.mxu0 0.0
    %322 = vmatprep.subr.mxu0 0.0
    %323 = vmatpush2.msra.mxu0 0.0
    %324 = vmatprep.subr.mxu0 0.0
    %325 = vmatpush2.msra.mxu0 0.0
    %326 = vmatprep.subr.mxu0 0.0
    %327 = vmatpush2.msra.mxu0 0.0
    %328 = vmatprep.subr.mxu0 0.0
    %329 = vmatpush2.msra.mxu0 0.0
    %330 = vmatprep.subr.mxu0 0.0
    %331 = vmatpush2.msra.mxu0 0.0
    %332 = vmatprep.subr.mxu0 0.0
    %333 = vmatpush2.msra.mxu0 0.0
    %334 = vmatprep.subr.mxu0 0.0
    %335 = vmatpush2.msra.mxu0 0.0
    %336 = vmatprep.subr.mxu0 0.0
    %337 = vmatpush2.msra.mxu0 0.0
    %338 = vmatprep.mubr.f32.mxu0 0.0
    %339 = vmatmul.mubr.f32.gmra.mxu0 %v250
    %v340 = vpop.f32.mrf.mxu0
    %v341 = vadd.f32 %v272, %v340
    %v342 = vpop.f32.mrf.mxu0
    %343 = vdwg.mxu0
    %v344 = vld [vmem:[#allocation11] sm:$0xff]
    %v345 = vld [vmem:[#allocation11 + $0x8] sm:$0xff]
    %v346 = vld [vmem:[#allocation11 + $0x10] sm:$0xff]
    %v347 = vld [vmem:[#allocation11 + $0x18] sm:$0xff]
    %v348 = vld [vmem:[#allocation11 + $0x20] sm:$0xff]
    %v349 = vld [vmem:[#allocation11 + $0x28] sm:$0xff]
    %v350 = vld [vmem:[#allocation11 + $0x30] sm:$0xff]
    %v351 = vld [vmem:[#allocation11 + $0x38] sm:$0xff]
    %v352 = vld [vmem:[#allocation11 + $0x40] sm:$0xff]
    %v353 = vld [vmem:[#allocation11 + $0x48] sm:$0xff]
    %v354 = vld [vmem:[#allocation11 + $0x50] sm:$0xff]
    %v355 = vld [vmem:[#allocation11 + $0x58] sm:$0xff]
    %v356 = vld [vmem:[#allocation11 + $0x60] sm:$0xff]
    %v357 = vld [vmem:[#allocation11 + $0x68] sm:$0xff]
    %v358 = vld [vmem:[#allocation11 + $0x70] sm:$0xff]
    %v359 = vld [vmem:[#allocation11 + $0x78] sm:$0xff]
    %v360 = vld [vmem:[#allocation13] sm:$0xff]
    %v361 = vld [vmem:[#allocation13 + $0x8] sm:$0xff]
    %v362 = vld [vmem:[#allocation13 + $0x10] sm:$0xff]
    %v363 = vld [vmem:[#allocation13 + $0x18] sm:$0xff]
    %v364 = vld [vmem:[#allocation13 + $0x20] sm:$0xff]
    %v365 = vld [vmem:[#allocation13 + $0x28] sm:$0xff]
    %v366 = vld [vmem:[#allocation13 + $0x30] sm:$0xff]
    %v367 = vld [vmem:[#allocation13 + $0x38] sm:$0xff]
    %v368 = vld [vmem:[#allocation13 + $0x40] sm:$0xff]
    %v369 = vld [vmem:[#allocation13 + $0x48] sm:$0xff]
    %v370 = vld [vmem:[#allocation13 + $0x50] sm:$0xff]
    %v371 = vld [vmem:[#allocation13 + $0x58] sm:$0xff]
    %v372 = vld [vmem:[#allocation13 + $0x60] sm:$0xff]
    %v373 = vld [vmem:[#allocation13 + $0x68] sm:$0xff]
    %v374 = vld [vmem:[#allocation13 + $0x70] sm:$0xff]
    %v375 = vld [vmem:[#allocation13 + $0x78] sm:$0xff]
    %v376 = vld [vmem:[%s8] sm:$0xff]
    %377 = vmatprep.subr.mxu0 0.0
    %378 = vmatpush1.msra.mxu0 %v375
    %379 = vmatprep.subr.mxu0 0.0
    %380 = vmatpush1.msra.mxu0 %v374
    %381 = vmatprep.subr.mxu0 0.0
    %382 = vmatpush1.msra.mxu0 %v373
    %383 = vmatprep.subr.mxu0 0.0
    %384 = vmatpush1.msra.mxu0 %v372
    %385 = vmatprep.subr.mxu0 0.0
    %386 = vmatpush1.msra.mxu0 %v371
    %387 = vmatprep.subr.mxu0 0.0
    %388 = vmatpush1.msra.mxu0 %v370
    %389 = vmatprep.subr.mxu0 0.0
    %390 = vmatpush1.msra.mxu0 %v369
    %391 = vmatprep.subr.mxu0 0.0
    %392 = vmatpush1.msra.mxu0 %v368
    %393 = vmatprep.subr.mxu0 0.0
    %394 = vmatpush1.msra.mxu0 %v367
    %395 = vmatprep.subr.mxu0 0.0
    %396 = vmatpush1.msra.mxu0 %v366
    %397 = vmatprep.subr.mxu0 0.0
    %398 = vmatpush1.msra.mxu0 %v365
    %399 = vmatprep.subr.mxu0 0.0
    %400 = vmatpush1.msra.mxu0 %v364
    %401 = vmatprep.subr.mxu0 0.0
    %402 = vmatpush1.msra.mxu0 %v363
    %403 = vmatprep.subr.mxu0 0.0
    %404 = vmatpush1.msra.mxu0 %v362
    %405 = vmatprep.subr.mxu0 0.0
    %406 = vmatpush1.msra.mxu0 %v361
    %407 = vmatprep.subr.mxu0 0.0
    %408 = vmatpush1.msra.mxu0 %v360
    %409 = vmatprep.subr.mxu0 0.0
    %410 = vmatpush2.msra.mxu0 0.0
    %411 = vmatprep.subr.mxu0 0.0
    %412 = vmatpush2.msra.mxu0 0.0
    %413 = vmatprep.subr.mxu0 0.0
    %414 = vmatpush2.msra.mxu0 0.0
    %415 = vmatprep.subr.mxu0 0.0
    %416 = vmatpush2.msra.mxu0 0.0
    %417 = vmatprep.subr.mxu0 0.0
    %418 = vmatpush2.msra.mxu0 0.0
    %419 = vmatprep.subr.mxu0 0.0
    %420 = vmatpush2.msra.mxu0 0.0
    %421 = vmatprep.subr.mxu0 0.0
    %422 = vmatpush2.msra.mxu0 0.0
    %423 = vmatprep.subr.mxu0 0.0
    %424 = vmatpush2.msra.mxu0 0.0
    %425 = vmatprep.subr.mxu0 0.0
    %426 = vmatpush2.msra.mxu0 0.0
    %427 = vmatprep.subr.mxu0 0.0
    %428 = vmatpush2.msra.mxu0 0.0
    %429 = vmatprep.subr.mxu0 0.0
    %430 = vmatpush2.msra.mxu0 0.0
    %431 = vmatprep.subr.mxu0 0.0
    %432 = vmatpush2.msra.mxu0 0.0
    %433 = vmatprep.subr.mxu0 0.0
    %434 = vmatpush2.msra.mxu0 0.0
    %435 = vmatprep.subr.mxu0 0.0
    %436 = vmatpush2.msra.mxu0 0.0
    %437 = vmatprep.subr.mxu0 0.0
    %438 = vmatpush2.msra.mxu0 0.0
    %439 = vmatprep.subr.mxu0 0.0
    %440 = vmatpush2.msra.mxu0 0.0
    %441 = vmatprep.mubr.f32.mxu0 0.0
    %442 = vmatmul.mubr.f32.gmra.mxu0 %v376
    %v443 = vpop.f32.mrf.mxu0
    %v444 = vadd.f32 0.0, %v443
    %v445 = vpop.f32.mrf.mxu0
    %446 = vdwg.mxu0
    %447 = vmatprep.subr.mxu0 0.0
    %448 = vmatpush1.msra.mxu0 %v359
    %449 = vmatprep.subr.mxu0 0.0
    %450 = vmatpush1.msra.mxu0 %v358
    %451 = vmatprep.subr.mxu0 0.0
    %452 = vmatpush1.msra.mxu0 %v357
    %453 = vmatprep.subr.mxu0 0.0
    %454 = vmatpush1.msra.mxu0 %v356
    %455 = vmatprep.subr.mxu0 0.0
    %456 = vmatpush1.msra.mxu0 %v355
    %457 = vmatprep.subr.mxu0 0.0
    %458 = vmatpush1.msra.mxu0 %v354
    %459 = vmatprep.subr.mxu0 0.0
    %460 = vmatpush1.msra.mxu0 %v353
    %461 = vmatprep.subr.mxu0 0.0
    %462 = vmatpush1.msra.mxu0 %v352
    %463 = vmatprep.subr.mxu0 0.0
    %464 = vmatpush1.msra.mxu0 %v351
    %465 = vmatprep.subr.mxu0 0.0
    %466 = vmatpush1.msra.mxu0 %v350
    %467 = vmatprep.subr.mxu0 0.0
    %468 = vmatpush1.msra.mxu0 %v349
    %469 = vmatprep.subr.mxu0 0.0
    %470 = vmatpush1.msra.mxu0 %v348
    %471 = vmatprep.subr.mxu0 0.0
    %472 = vmatpush1.msra.mxu0 %v347
    %473 = vmatprep.subr.mxu0 0.0
    %474 = vmatpush1.msra.mxu0 %v346
    %475 = vmatprep.subr.mxu0 0.0
    %476 = vmatpush1.msra.mxu0 %v345
    %477 = vmatprep.subr.mxu0 0.0
    %478 = vmatpush1.msra.mxu0 %v344
    %479 = vmatprep.subr.mxu0 0.0
    %480 = vmatpush2.msra.mxu0 0.0
    %481 = vmatprep.subr.mxu0 0.0
    %482 = vmatpush2.msra.mxu0 0.0
    %483 = vmatprep.subr.mxu0 0.0
    %484 = vmatpush2.msra.mxu0 0.0
    %485 = vmatprep.subr.mxu0 0.0
    %486 = vmatpush2.msra.mxu0 0.0
    %487 = vmatprep.subr.mxu0 0.0
    %488 = vmatpush2.msra.mxu0 0.0
    %489 = vmatprep.subr.mxu0 0.0
    %490 = vmatpush2.msra.mxu0 0.0
    %491 = vmatprep.subr.mxu0 0.0
    %492 = vmatpush2.msra.mxu0 0.0
    %493 = vmatprep.subr.mxu0 0.0
    %494 = vmatpush2.msra.mxu0 0.0
    %495 = vmatprep.subr.mxu0 0.0
    %496 = vmatpush2.msra.mxu0 0.0
    %497 = vmatprep.subr.mxu0 0.0
    %498 = vmatpush2.msra.mxu0 0.0
    %499 = vmatprep.subr.mxu0 0.0
    %500 = vmatpush2.msra.mxu0 0.0
    %501 = vmatprep.subr.mxu0 0.0
    %502 = vmatpush2.msra.mxu0 0.0
    %503 = vmatprep.subr.mxu0 0.0
    %504 = vmatpush2.msra.mxu0 0.0
    %505 = vmatprep.subr.mxu0 0.0
    %506 = vmatpush2.msra.mxu0 0.0
    %507 = vmatprep.subr.mxu0 0.0
    %508 = vmatpush2.msra.mxu0 0.0
    %509 = vmatprep.subr.mxu0 0.0
    %510 = vmatpush2.msra.mxu0 0.0
    %511 = vmatprep.mubr.f32.mxu0 0.0
    %512 = vmatmul.mubr.f32.gmra.mxu0 %v341
    %v513 = vpop.f32.mrf.mxu0
    %v514 = vadd.f32 %v444, %v513
    %v515 = vpop.f32.mrf.mxu0
    %516 = vdwg.mxu0
    %v517 = vld [vmem:[#allocation14] sm:$0x1]
    %v519 = vlaneseq
    %v520 = vshrl.u32 %v519, 7
    %v521 = vsub.s32 0, %v520
    %v522 = vrot.slane %v517, %v521
    %v524 = vadd.f32 %v514, %v522
    %v525 = vxor.u32 %v524, 2147483648
    %v526 = vmul.f32 %v525, 1.442695
    %v527 = vpow.pop %v526
    %v528 = vadd.f32 %v527, 1.0
    %v529 = vrcp.pop %v528
    %v530 = vmul.f32 1.0, %v529
    %v531 = vtanh.pop %v524
    %v532 = vld [vmem:[%s9] sm:$0xff]
    %534 = vrot.lane.b32.xlu0 %v532, 32
    %v535 = vpop.permute.xlu0 %534
    %v537 = vmul.f32 %v530, %v535
    %539 = vrot.lane.b32.xlu0 %v531, 64
    %v540 = vpop.permute.xlu0 %539
    %v542 = vmul.f32 %v530, %v540
    %544 = vrot.lane.b32.xlu0 %v542, 32
    %v545 = vpop.permute.xlu0 %544
    %v547 = vadd.f32 %v537, %v545
    %v548 = vtanh.pop %v547
    %550 = vrot.lane.b32.xlu0 %v548, 64
    %v551 = vpop.permute.xlu0 %550
    %v553 = vmul.f32 %v530, %v551
    %v554 = vld [vmem:[#allocation16] sm:$0xff]
    %v555 = vld [vmem:[#allocation16 + $0x8] sm:$0xff]
    %v556 = vld [vmem:[#allocation16 + $0x10] sm:$0xff]
    %v557 = vld [vmem:[#allocation16 + $0x18] sm:$0xff]
    %v558 = vld [vmem:[%s11] sm:$0x1]
    %v560 = vlaneseq
    %v561 = vshrl.u32 %v560, 7
    %v562 = vsub.s32 0, %v561
    %v563 = vrot.slane %v558, %v562
    %566 = vrot.lane.b32.xlu0 %v553, 32
    %v567 = vpop.permute.xlu0 %566
    %vm568 = vcmask 261120
    %v569 = vsel %vm568, %v567, 0
    %571 = vmatprep.subr.mxu0 0.0
    %572 = vmatpush1.msra.mxu0 0.0
    %573 = vmatprep.subr.mxu0 0.0
    %574 = vmatpush1.msra.mxu0 0.0
    %575 = vmatprep.subr.mxu0 0.0
    %576 = vmatpush1.msra.mxu0 0.0
    %577 = vmatprep.subr.mxu0 0.0
    %578 = vmatpush1.msra.mxu0 0.0
    %579 = vmatprep.subr.mxu0 0.0
    %580 = vmatpush1.msra.mxu0 0.0
    %581 = vmatprep.subr.mxu0 0.0
    %582 = vmatpush1.msra.mxu0 0.0
    %583 = vmatprep.subr.mxu0 0.0
    %584 = vmatpush1.msra.mxu0 0.0
    %585 = vmatprep.subr.mxu0 0.0
    %586 = vmatpush1.msra.mxu0 0.0
    %587 = vmatprep.subr.mxu0 0.0
    %588 = vmatpush1.msra.mxu0 0.0
    %589 = vmatprep.subr.mxu0 0.0
    %590 = vmatpush1.msra.mxu0 0.0
    %591 = vmatprep.subr.mxu0 0.0
    %592 = vmatpush1.msra.mxu0 0.0
    %593 = vmatprep.subr.mxu0 0.0
    %594 = vmatpush1.msra.mxu0 0.0
    %595 = vmatprep.subr.mxu0 0.0
    %596 = vmatpush1.msra.mxu0 %v557
    %597 = vmatprep.subr.mxu0 0.0
    %598 = vmatpush1.msra.mxu0 %v556
    %599 = vmatprep.subr.mxu0 0.0
    %600 = vmatpush1.msra.mxu0 %v555
    %601 = vmatprep.subr.mxu0 0.0
    %602 = vmatpush1.msra.mxu0 %v554
    %603 = vmatprep.subr.mxu0 0.0
    %604 = vmatpush2.msra.mxu0 0.0
    %605 = vmatprep.subr.mxu0 0.0
    %606 = vmatpush2.msra.mxu0 0.0
    %607 = vmatprep.subr.mxu0 0.0
    %608 = vmatpush2.msra.mxu0 0.0
    %609 = vmatprep.subr.mxu0 0.0
    %610 = vmatpush2.msra.mxu0 0.0
    %611 = vmatprep.subr.mxu0 0.0
    %612 = vmatpush2.msra.mxu0 0.0
    %613 = vmatprep.subr.mxu0 0.0
    %614 = vmatpush2.msra.mxu0 0.0
    %615 = vmatprep.subr.mxu0 0.0
    %616 = vmatpush2.msra.mxu0 0.0
    %617 = vmatprep.subr.mxu0 0.0
    %618 = vmatpush2.msra.mxu0 0.0
    %619 = vmatprep.subr.mxu0 0.0
    %620 = vmatpush2.msra.mxu0 0.0
    %621 = vmatprep.subr.mxu0 0.0
    %622 = vmatpush2.msra.mxu0 0.0
    %623 = vmatprep.subr.mxu0 0.0
    %624 = vmatpush2.msra.mxu0 0.0
    %625 = vmatprep.subr.mxu0 0.0
    %626 = vmatpush2.msra.mxu0 0.0
    %627 = vmatprep.subr.mxu0 0.0
    %628 = vmatpush2.msra.mxu0 0.0
    %629 = vmatprep.subr.mxu0 0.0
    %630 = vmatpush2.msra.mxu0 0.0
    %631 = vmatprep.subr.mxu0 0.0
    %632 = vmatpush2.msra.mxu0 0.0
    %633 = vmatprep.subr.mxu0 0.0
    %634 = vmatpush2.msra.mxu0 0.0
    %635 = vmatprep.mubr.f32.mxu0 0.0
    %636 = vmatmul.mubr.f32.gmra.mxu0 %v569
    %v637 = vpop.f32.mrf.mxu0
    %v638 = vadd.f32 %v563, %v637
    %v639 = vpop.f32.mrf.mxu0
    %640 = vdwg.mxu0
    %642 = vst.msk [vmem:[#allocation17] sm:$0xff] %vm568, %v567
    %644 = vrot.lane.b32.xlu0 %v547, 96
    %v645 = vpop.permute.xlu0 %644
    %647 = vst.msk [vmem:[#allocation17 + $0x8] sm:$0xff] %vm568, %v645
    %648 = vst [vmem:[#allocation17 + $0x10] sm:$0xff] %v638
    // Predicated region
    $region86: #{tpu_custom_call.1} parent=1 // pred_check
      _
    $region87: #{tpu_custom_call.1} parent=1 // pred_check_branch
      %650 = sbr.rel (0) target = $region89
    $region88: #{tpu_custom_call.1} parent=1 // pred_region
      %s652 = ssub.s32 384, 384
      %653 = vsyncadd [#allocation4], %s652
      %s655 = sshll.u32 [#allocation17], 4
      %s656 = int_to_ptr.vmem [resolvable:$true] %s655
      %658 = dma.vmem_to_hbm [thread:$0]  %s656, 384, %s12, [#allocation4]
    $region89: #{tpu_custom_call.1} parent=1 // pred_fallthru
      _
    // Predicated region
    $region90: #{tpu_custom_call.1} parent=1 // pred_check
      _
    $region91: #{tpu_custom_call.1} parent=1 // pred_check_branch
      %660 = sbr.rel (0) target = $region93
    $region92: #{tpu_custom_call.1} parent=1 // pred_region
      %661 = dma.done [#allocation4], 384
    $region93: #{tpu_custom_call.1} parent=1 // pred_fallthru
      _
    %662 = vsyncpa [#allocation3], 1
    %663 = vsyncpa [#allocation6], 1
    %664 = vsyncpa [#allocation9], 1
    %665 = vsyncpa [#allocation12], 1
    %666 = vsyncpa [#allocation15], 1
    %667 = vsyncpa [#allocation4], 1

</llo_original>
